<compile_context>
chip_gen: v7x
topology: tpu7x:2x2x1
jax: 0.10.0
libtpu: 0.0.40
codegen_flags: <defaults>
</compile_context>

<pallas_src>
import functools

import jax
import jax.numpy as jnp
from jax.experimental import pallas as pl
from jax.experimental.pallas import tpu as pltpu

EPS = 1e-5


# ----------------------------- in-kernel helpers -----------------------------

def _shifted_rows(h):
    """up[r] = h[r-1] (zero at r=0), down[r] = h[r+1] (zero at r=H-1)."""
    rows, wc = h.shape
    zero = jnp.zeros((1, wc), h.dtype)
    up = jnp.concatenate([zero, h[:rows - 1, :]], axis=0)
    down = jnp.concatenate([h[1:, :], zero], axis=0)
    return up, down


def _conv_rows(h, wb_ref):
    """3x3 'same' conv on a lane-dense (H, W*C) slab via banded (W*C, W*C) weights."""
    up, down = _shifted_rows(h)
    return (jnp.dot(up, wb_ref[0], preferred_element_type=jnp.float32)
            + jnp.dot(h, wb_ref[1], preferred_element_type=jnp.float32)
            + jnp.dot(down, wb_ref[2], preferred_element_type=jnp.float32))


def _col_stats(y):
    """Fused BN partial stats: (2, W*C) = [column sum ; column sum-of-squares]."""
    return jnp.concatenate([jnp.sum(y, axis=0, keepdims=True),
                            jnp.sum(y * y, axis=0, keepdims=True)], axis=0)


# --------------------------------- kernels -----------------------------------

def _conv1_kernel(x_ref, wb_ref, y_ref, st_ref):
    # x_ref: (1, H, W*C); wb_ref: (3, W*C, W*C)
    y = _conv_rows(x_ref[0], wb_ref)
    y_ref[0] = y
    st_ref[0] = _col_stats(y)


def _bn_relu_conv2_kernel(y1_ref, a_ref, c_ref, wb_ref, y2_ref, st_ref):
    # BN1 as a per-lane affine (a, c precomputed from global stats) + ReLU, then conv2.
    h = jnp.maximum(y1_ref[0] * a_ref[...] + c_ref[...], 0.0)
    y2 = _conv_rows(h, wb_ref)
    y2_ref[0] = y2
    st_ref[0] = _col_stats(y2)


def _bn_scale_residual_kernel(y2_ref, a_ref, c_ref, x_ref, out_ref, *, res_scale):
    out_ref[0] = (y2_ref[0] * a_ref[...] + c_ref[...]) * res_scale + x_ref[0]


# ------------------------------- wrapper glue ---------------------------------

def _banded_weight(w, width):
    """(3,3,Cin,Cout) HWIO -> (3, W*Cin, W*Cout) banded matrices (zero-pad in W built in)."""
    _, _, cin, cout = w.shape
    d = jnp.arange(width)[:, None] - jnp.arange(width)[None, :]   # w_in - w_out
    kx = d + 1
    valid = (kx >= 0) & (kx <= 2)
    kx_c = jnp.clip(kx, 0, 2)
    mats = []
    for ky in range(3):
        blocks = w[ky][kx_c]                                       # (W, W, Cin, Cout)
        blocks = jnp.where(valid[:, :, None, None], blocks, 0.0)
        mats.append(blocks.transpose(0, 2, 1, 3).reshape(width * cin, width * cout))
    return jnp.stack(mats, axis=0).astype(jnp.float32)


def _bn_affine(stats, gamma, beta, width, chans, count):
    """Finalize global BN stats -> per-lane affine (scale, shift) of shape (1, W*C)."""
    s = stats[:, 0, :].sum(axis=0).reshape(width, chans).sum(axis=0)     # (C,)
    ss = stats[:, 1, :].sum(axis=0).reshape(width, chans).sum(axis=0)    # (C,)
    mean = s / count
    var = ss / count - mean * mean          # biased variance (PyTorch train-mode norm)
    a = gamma * jax.lax.rsqrt(var + EPS)
    c = beta - mean * a
    wc = width * chans
    return jnp.tile(a, width).reshape(1, wc), jnp.tile(c, width).reshape(1, wc)


def resblock_srresnet(x_nchw, w1, w2, g1, b1, g2, b2, res_scale=1.0):
    """x_nchw: (N, C, H, W) f32. Returns (N, C, H, W) f32, matching the PyTorch module."""
    N, C, H, W = x_nchw.shape
    WC = W * C

    # Canonical lane-dense layout: (N, H, W*C). Same slab layout for x, y1, y2, out.
    x2d = jnp.transpose(x_nchw, (0, 2, 3, 1)).reshape(N, H, WC).astype(jnp.float32)

    wb1 = _banded_weight(w1, W)
    wb2 = _banded_weight(w2, W)

    params = pltpu.CompilerParams(dimension_semantics=("parallel",))
    act_spec = pl.BlockSpec((1, H, WC), lambda i: (i, 0, 0))
    stat_spec = pl.BlockSpec((1, 2, WC), lambda i: (i, 0, 0))
    wt_spec = pl.BlockSpec((3, WC, WC), lambda i: (0, 0, 0))
    vec_spec = pl.BlockSpec((1, WC), lambda i: (0, 0))
    cnt = N * H * W

    # Pass 1: conv1 + fused BN1 partial stats (one read/write of the activation).
    y1, st1 = pl.pallas_call(
        _conv1_kernel,
        out_shape=(jax.ShapeDtypeStruct((N, H, WC), jnp.float32),
                   jax.ShapeDtypeStruct((N, 2, WC), jnp.float32)),
        grid=(N,),
        in_specs=[act_spec, wt_spec],
        out_specs=(act_spec, stat_spec),
        compiler_params=params,
    )(x2d, wb1)

    a1, c1 = _bn_affine(st1, g1, b1, W, C, cnt)

    # Pass 2: BN1 (global, as affine) + ReLU + conv2 + fused BN2 partial stats.
    y2, st2 = pl.pallas_call(
        _bn_relu_conv2_kernel,
        out_shape=(jax.ShapeDtypeStruct((N, H, WC), jnp.float32),
                   jax.ShapeDtypeStruct((N, 2, WC), jnp.float32)),
        grid=(N,),
        in_specs=[act_spec, vec_spec, vec_spec, wt_spec],
        out_specs=(act_spec, stat_spec),
        compiler_params=params,
    )(y1, a1, c1, wb2)

    a2, c2 = _bn_affine(st2, g2, b2, W, C, cnt)

    # Pass 3: BN2 (affine) * res_scale + identity shortcut (aligned load of unpadded x).
    out2d = pl.pallas_call(
        functools.partial(_bn_scale_residual_kernel, res_scale=res_scale),
        out_shape=jax.ShapeDtypeStruct((N, H, WC), jnp.float32),
        grid=(N,),
        in_specs=[act_spec, vec_spec, vec_spec, act_spec],
        out_specs=act_spec,
        compiler_params=params,
    )(y2, a2, c2, x2d)

    return jnp.transpose(out2d.reshape(N, H, W, C), (0, 3, 1, 2))


# ------------------------------- reference & test ------------------------------

def _reference(x_nchw, w1, w2, g1, b1, g2, b2, res_scale):
    """Pure-JAX reference mirroring the PyTorch forward (train-mode BN)."""
    def conv(x, w):
        return jax.lax.conv_general_dilated(
            x, w, window_strides=(1, 1), padding="SAME",
            dimension_numbers=("NCHW", "HWIO", "NCHW"))

    def bn(y, g, b):
        mean = jnp.mean(y, axis=(0, 2, 3), keepdims=True)
        var = jnp.mean((y - mean) ** 2, axis=(0, 2, 3), keepdims=True)
        return ((y - mean) * jax.lax.rsqrt(var + EPS)
                * g.reshape(1, -1, 1, 1) + b.reshape(1, -1, 1, 1))

    h = jnp.maximum(bn(conv(x_nchw, w1), g1, b1), 0.0)
    return bn(conv(h, w2), g2, b2) * res_scale + x_nchw


if __name__ == "__main__":
    key = jax.random.PRNGKey(0)
    N, C, H, W = 2, 8, 16, 16        # batch=2, n_feats=8, spatial=16 -> W*C = 128
    k_x, k_w1, k_w2 = jax.random.split(key, 3)

    x = jax.random.normal(k_x, (N, C, H, W), dtype=jnp.float32)

    fan_in = C * 3 * 3
    bound = 1.0 / (fan_in ** 0.5)
    w1 = jax.random.uniform(k_w1, (3, 3, C, C), jnp.float32, -bound, bound)  # (kh,kw,Cin,Cout)
    w2 = jax.random.uniform(k_w2, (3, 3, C, C), jnp.float32, -bound, bound)
    g1 = jnp.ones((C,), jnp.float32)
    b1 = jnp.zeros((C,), jnp.float32)
    g2 = jnp.ones((C,), jnp.float32)
    b2 = jnp.zeros((C,), jnp.float32)

    res_scale = 1.0
    out = resblock_srresnet(x, w1, w2, g1, b1, g2, b2, res_scale=res_scale)
    jax.block_until_ready(out)

    ref = _reference(x, w1, w2, g1, b1, g2, b2, res_scale)
    assert out.shape == (N, C, H, W)
    max_err = float(jnp.max(jnp.abs(out - ref)))
    assert jnp.allclose(out, ref, atol=2e-3, rtol=2e-3), max_err
    print("KERNEL_OK")
</pallas_src>

<mosaic_0001>
module attributes {stable_mosaic.version = 11 : i64} {
  func.func @_conv1_kernel(%arg0: i32, %arg1: memref<1x16x128xf32, #tpu.memory_space<vmem>>, %arg2: memref<3x128x128xf32, #tpu.memory_space<vmem>>, %arg3: memref<1x16x128xf32, #tpu.memory_space<vmem>>, %arg4: memref<1x2x128xf32, #tpu.memory_space<vmem>>) attributes {dimension_semantics = [#tpu.dimension_semantics<parallel>], iteration_bounds = array<i64: 2>, scalar_prefetch = 0 : i64, scratch_operands = 0 : i64, tpu.core_type = #tpu.core_type<tc>, window_params = [{transform_indices = @transform_0, window_bounds = array<i64: 1, 16, 128>}, {pipeline_mode = #tpu.pipeline_mode<synchronous>, transform_indices = @transform_1, window_bounds = array<i64: 3, 128, 128>}, {transform_indices = @transform_2, window_bounds = array<i64: 1, 16, 128>}, {transform_indices = @transform_3, window_bounds = array<i64: 1, 2, 128>}]} {
    %c0 = arith.constant 0 : index
    %c0_0 = arith.constant 0 : index
    %c0_1 = arith.constant 0 : index
    %0 = vector.load %arg1[%c0, %c0_0, %c0_1] : memref<1x16x128xf32, #tpu.memory_space<vmem>>, vector<1x16x128xf32>
    %1 = vector.shape_cast %0 : vector<1x16x128xf32> to vector<16x128xf32>
    %cst = arith.constant 0.000000e+00 : f32
    %2 = vector.broadcast %cst : f32 to vector<1x128xf32>
    %3 = vector.extract_strided_slice %1 {offsets = [0, 0], sizes = [15, 128], strides = [1, 1]} : vector<16x128xf32> to vector<15x128xf32>
    %4 = tpu.concatenate %2, %3 in 0 : vector<1x128xf32>, vector<15x128xf32> -> vector<16x128xf32>
    %5 = vector.extract_strided_slice %1 {offsets = [1, 0], sizes = [15, 128], strides = [1, 1]} : vector<16x128xf32> to vector<15x128xf32>
    %6 = tpu.concatenate %5, %2 in 0 : vector<15x128xf32>, vector<1x128xf32> -> vector<16x128xf32>
    %c0_2 = arith.constant 0 : index
    %c0_3 = arith.constant 0 : index
    %c0_4 = arith.constant 0 : index
    %7 = vector.load %arg2[%c0_2, %c0_3, %c0_4] : memref<3x128x128xf32, #tpu.memory_space<vmem>>, vector<1x128x128xf32>
    %8 = vector.shape_cast %7 : vector<1x128x128xf32> to vector<128x128xf32>
    %cst_5 = arith.constant dense<0.000000e+00> : vector<16x128xf32>
    %9 = tpu.matmul %4, %8, %cst_5 {dimension_numbers = #tpu.dot_dimension_numbers<[1], [0], [0], [1], [0, 0, 1, 1], [], []>} : vector<16x128xf32>, vector<128x128xf32>, vector<16x128xf32> -> vector<16x128xf32>
    %c1 = arith.constant 1 : index
    %c0_6 = arith.constant 0 : index
    %c0_7 = arith.constant 0 : index
    %10 = vector.load %arg2[%c1, %c0_6, %c0_7] : memref<3x128x128xf32, #tpu.memory_space<vmem>>, vector<1x128x128xf32>
    %11 = vector.shape_cast %10 : vector<1x128x128xf32> to vector<128x128xf32>
    %cst_8 = arith.constant dense<0.000000e+00> : vector<16x128xf32>
    %12 = tpu.matmul %1, %11, %cst_8 {dimension_numbers = #tpu.dot_dimension_numbers<[1], [0], [0], [1], [0, 0, 1, 1], [], []>} : vector<16x128xf32>, vector<128x128xf32>, vector<16x128xf32> -> vector<16x128xf32>
    %13 = arith.addf %9, %12 : vector<16x128xf32>
    %c2 = arith.constant 2 : index
    %c0_9 = arith.constant 0 : index
    %c0_10 = arith.constant 0 : index
    %14 = vector.load %arg2[%c2, %c0_9, %c0_10] : memref<3x128x128xf32, #tpu.memory_space<vmem>>, vector<1x128x128xf32>
    %15 = vector.shape_cast %14 : vector<1x128x128xf32> to vector<128x128xf32>
    %cst_11 = arith.constant dense<0.000000e+00> : vector<16x128xf32>
    %16 = tpu.matmul %6, %15, %cst_11 {dimension_numbers = #tpu.dot_dimension_numbers<[1], [0], [0], [1], [0, 0, 1, 1], [], []>} : vector<16x128xf32>, vector<128x128xf32>, vector<16x128xf32> -> vector<16x128xf32>
    %17 = arith.addf %13, %16 : vector<16x128xf32>
    %c0_12 = arith.constant 0 : index
    %c0_13 = arith.constant 0 : index
    %c0_14 = arith.constant 0 : index
    %18 = vector.load %arg3[%c0_12, %c0_13, %c0_14] : memref<1x16x128xf32, #tpu.memory_space<vmem>>, vector<1x16x128xf32>
    %19 = vector.shape_cast %18 : vector<1x16x128xf32> to vector<16x128xf32>
    %20 = vector.shape_cast %17 : vector<16x128xf32> to vector<1x16x128xf32>
    tpu.vector_store %arg3[%c0_12, %c0_13, %c0_14], %20 {strides = array<i32>} : memref<1x16x128xf32, #tpu.memory_space<vmem>>, vector<1x16x128xf32>,
    %cst_15 = arith.constant dense<0.000000e+00> : vector<128xf32>
    %21 = vector.multi_reduction <add>, %17, %cst_15 [0] : vector<16x128xf32> to vector<128xf32>
    %22 = vector.shape_cast %21 : vector<128xf32> to vector<1x128xf32>
    %23 = arith.mulf %17, %17 : vector<16x128xf32>
    %cst_16 = arith.constant dense<0.000000e+00> : vector<128xf32>
    %24 = vector.multi_reduction <add>, %23, %cst_16 [0] : vector<16x128xf32> to vector<128xf32>
    %25 = vector.shape_cast %24 : vector<128xf32> to vector<1x128xf32>
    %26 = tpu.concatenate %22, %25 in 0 : vector<1x128xf32>, vector<1x128xf32> -> vector<2x128xf32>
    %c0_17 = arith.constant 0 : index
    %c0_18 = arith.constant 0 : index
    %c0_19 = arith.constant 0 : index
    %27 = vector.load %arg4[%c0_17, %c0_18, %c0_19] : memref<1x2x128xf32, #tpu.memory_space<vmem>>, vector<1x2x128xf32>
    %28 = vector.shape_cast %27 : vector<1x2x128xf32> to vector<2x128xf32>
    %29 = vector.shape_cast %26 : vector<2x128xf32> to vector<1x2x128xf32>
    tpu.vector_store %arg4[%c0_17, %c0_18, %c0_19], %29 {strides = array<i32>} : memref<1x2x128xf32, #tpu.memory_space<vmem>>, vector<1x2x128xf32>,
    return
  }
  func.func @transform_0(%arg0: i32) -> (i32, i32, i32) {
    %c0_i32 = arith.constant 0 : i32
    %c0_i32_0 = arith.constant 0 : i32
    %c0_i32_1 = arith.constant 0 : i32
    return %arg0, %c0_i32, %c0_i32_0 : i32, i32, i32
  }
  func.func @transform_1(%arg0: i32) -> (i32, i32, i32) {
    %c0_i32 = arith.constant 0 : i32
    %c0_i32_0 = arith.constant 0 : i32
    %c0_i32_1 = arith.constant 0 : i32
    %c0_i32_2 = arith.constant 0 : i32
    return %c0_i32, %c0_i32_0, %c0_i32_1 : i32, i32, i32
  }
  func.func @transform_2(%arg0: i32) -> (i32, i32, i32) {
    %c0_i32 = arith.constant 0 : i32
    %c0_i32_0 = arith.constant 0 : i32
    %c0_i32_1 = arith.constant 0 : i32
    return %arg0, %c0_i32, %c0_i32_0 : i32, i32, i32
  }
  func.func @transform_3(%arg0: i32) -> (i32, i32, i32) {
    %c0_i32 = arith.constant 0 : i32
    %c0_i32_0 = arith.constant 0 : i32
    %c0_i32_1 = arith.constant 0 : i32
    return %arg0, %c0_i32, %c0_i32_0 : i32, i32, i32
  }
}

</mosaic_0001>

<llo_original>
// kernel: tpu_custom_call.1
$region0: #{tpu_custom_call.1}
  #allocation0 [shape = 'u32[]', space=smem, size = 0x4, offset = 0x4, fixed_abs, tag = 'smem constant byte address 0x4 - core index']
  #allocation1 [shape = 'u32[144,128]{1,0:T(1,128)}', space=vmem, size = 0x12000, scoped, tag = 'internal scratch']
  %s0 = inlined_call_operand.hbm [shape: f32[2,16,128], index: 0, kind: input, shape index: {}]
  %s1 = inlined_call_operand.hbm [shape: f32[3,128,128], index: 1, kind: input, shape index: {}]
  %s2 = inlined_call_operand.hbm [shape: f32[2,16,128], index: 2, kind: output, shape index: {0}]
  %s3 = inlined_call_operand.hbm [shape: f32[2,2,128], index: 3, kind: output, shape index: {1}]
  %4 = xla_tuple %s2, %s3
  %s5 = sld [smem:[#allocation0]]
  $region57: #{tpu_custom_call.1} parent=0
    _
  %s7 = ssub.s32 1, %s5
  %s8 = scalar_select 0, %s7, %s5
  $region1: #{tpu_custom_call.1} parent=0
    #allocation2 [shape = 'u8[16384]{0}', space=vmem, size = 0x4000, scoped, tag = 'input window, operand 0']
    #allocation3 [shape = 's32[2]{0}', space=sflag, size = 0x8, scoped, tag = 'scoped memory for tpu_custom_call.1']
    #allocation4 [shape = 's32[2]{0}', space=sflag, size = 0x8, scoped, tag = 'scoped memory for tpu_custom_call.1']
    #allocation5 [shape = 'u8[196608]{0}', space=vmem, size = 0x30000, scoped, tag = 'input window, operand 1, single buffered']
    #allocation6 [shape = 's32[1]{0}', space=sflag, size = 0x4, scoped, tag = 'scoped memory for tpu_custom_call.1']
    #allocation7 [shape = 'u8[16384]{0}', space=vmem, size = 0x4000, scoped, tag = 'output window, operand 0']
    #allocation8 [shape = 'u8[2048]{0}', space=vmem, size = 0x800, scoped, tag = 'output window, operand 1']
    #allocation9 [shape = 's32[2]{0}', space=sflag, size = 0x8, scoped, tag = 'scoped memory for tpu_custom_call.1']
    %9 = vsyncpa [#allocation3], 0
    %s10 = scalar_lea.sflag [#allocation3], 1
    %11 = vsyncpa %s10, 0
    %12 = vsyncpa [#allocation6], 0
    %13 = vsyncpa [#allocation4], 0
    %s14 = scalar_lea.sflag [#allocation4], 1
    %15 = vsyncpa %s14, 0
    %16 = vsyncpa [#allocation9], 0
    %s17 = scalar_lea.sflag [#allocation9], 1
    %18 = vsyncpa %s17, 0
    loop: start=0, step=1, limit=4
    $region2: #{tpu_custom_call.1} parent=1 // loop_pre_header
      _
    $region3: #{tpu_custom_call.1} parent=1 // loop_header
      %s20 = sphi 0, %s24
      %p21 = scmp.ge.s32.totalorder %s20, 4
      %s30 = sphi 0, %s32
      %s33 = sphi 0, %s30
      %s34 = sphi 0, %s33
      %s50 = sphi 0, %s34
      %s54 = sphi 0, %s54
      %s56 = sphi 0, %s54
      %s57 = sphi 0, %s56
      %s71 = sphi 0, %s57
      %s77 = sphi 0, %s79
      %s80 = sphi 0, %s77
      %s81 = sphi 0, %s80
      %s97 = sphi 0, %s81
      %s103 = sphi 0, %s105
      %s106 = sphi 0, %s103
      %s107 = sphi 0, %s106
      %s123 = sphi 0, %s107
    $region4: #{tpu_custom_call.1} parent=1 // loop_header_branch
      %23 = sbr.rel (%p21) target = $region8
    $region5: #{tpu_custom_call.1} parent=1 // loop_body
      %s25 = ssub.s32 %s20, 1
      %s26 = ssub.s32 %s20, 2
      %s27 = sadd.s32 %s20, 1
      %s28 = ssub.s32 %s20, %s27
      %p29 = scmp.eq.s32.totalorder %s28, 0
      %s31 = sadd.s32 %s30, 1
      %s32 = scalar_select %p29, %s30, %s31
      %p35 = pneg %p29
      %p36 = scmp.eq.s32.totalorder %s20, 1
      %p37 = por %p35, %p36
      %p38 = scmp.ne.s32.totalorder %s30, %s33
      %p39 = scmp.eq.s32.totalorder %s20, 0
      %p40 = por %p38, %p39
      %p41 = scmp.ne.s32.totalorder %s30, %s33
      %p42 = scmp.eq.s32.totalorder %s25, 1
      %p43 = por %p41, %p42
      %p44 = scmp.ne.s32.totalorder %s33, %s34
      %p45 = scmp.eq.s32.totalorder %s25, 0
      %p46 = por %p44, %p45
      %p47 = scmp.ne.s32.totalorder %s33, %s34
      %p48 = scmp.eq.s32.totalorder %s26, 1
      %p49 = por %p47, %p48
      %p51 = scmp.ne.s32.totalorder %s34, %s50
      %p52 = scmp.eq.s32.totalorder %s26, 0
      %p53 = por %p51, %p52
      %s55 = sadd.s32 %s54, 1
      %p58 = scmp.eq.s32.totalorder %s20, 1
      %p59 = scmp.ne.s32.totalorder %s54, %s56
      %p60 = scmp.eq.s32.totalorder %s20, 0
      %p61 = por %p59, %p60
      %p62 = scmp.ne.s32.totalorder %s54, %s56
      %p63 = scmp.eq.s32.totalorder %s25, 1
      %p64 = por %p62, %p63
      %p65 = scmp.ne.s32.totalorder %s56, %s57
      %p66 = scmp.eq.s32.totalorder %s25, 0
      %p67 = por %p65, %p66
      %p68 = scmp.ne.s32.totalorder %s56, %s57
      %p69 = scmp.eq.s32.totalorder %s26, 1
      %p70 = por %p68, %p69
      %p72 = scmp.ne.s32.totalorder %s57, %s71
      %p73 = scmp.eq.s32.totalorder %s26, 0
      %p74 = por %p72, %p73
      %s75 = ssub.s32 %s20, %s27
      %p76 = scmp.eq.s32.totalorder %s75, 0
      %s78 = sadd.s32 %s77, 1
      %s79 = scalar_select %p76, %s77, %s78
      %p82 = pneg %p76
      %p83 = scmp.eq.s32.totalorder %s20, 1
      %p84 = por %p82, %p83
      %p85 = scmp.ne.s32.totalorder %s77, %s80
      %p86 = scmp.eq.s32.totalorder %s20, 0
      %p87 = por %p85, %p86
      %p88 = scmp.ne.s32.totalorder %s77, %s80
      %p89 = scmp.eq.s32.totalorder %s25, 1
      %p90 = por %p88, %p89
      %p91 = scmp.ne.s32.totalorder %s80, %s81
      %p92 = scmp.eq.s32.totalorder %s25, 0
      %p93 = por %p91, %p92
      %p94 = scmp.ne.s32.totalorder %s80, %s81
      %p95 = scmp.eq.s32.totalorder %s26, 1
      %p96 = por %p94, %p95
      %p98 = scmp.ne.s32.totalorder %s81, %s97
      %p99 = scmp.eq.s32.totalorder %s26, 0
      %p100 = por %p98, %p99
      %s101 = ssub.s32 %s20, %s27
      %p102 = scmp.eq.s32.totalorder %s101, 0
      %s104 = sadd.s32 %s103, 1
      %s105 = scalar_select %p102, %s103, %s104
      %p108 = pneg %p102
      %p109 = scmp.eq.s32.totalorder %s20, 1
      %p110 = por %p108, %p109
      %p111 = scmp.ne.s32.totalorder %s103, %s106
      %p112 = scmp.eq.s32.totalorder %s20, 0
      %p113 = por %p111, %p112
      %p114 = scmp.ne.s32.totalorder %s103, %s106
      %p115 = scmp.eq.s32.totalorder %s25, 1
      %p116 = por %p114, %p115
      %p117 = scmp.ne.s32.totalorder %s106, %s107
      %p118 = scmp.eq.s32.totalorder %s25, 0
      %p119 = por %p117, %p118
      %p120 = scmp.ne.s32.totalorder %s106, %s107
      %p121 = scmp.eq.s32.totalorder %s26, 1
      %p122 = por %p120, %p121
      %p124 = scmp.ne.s32.totalorder %s107, %s123
      %p125 = scmp.eq.s32.totalorder %s26, 0
      %p126 = por %p124, %p125
      %p127 = scmp.le.s32.totalorder 1, %s20
      %p128 = scmp.lt.s32.totalorder %s20, 3
      %p129 = pnand %p127, %p128
      %p130 = pneg %p129
      // Predicated region
      $region9: #{tpu_custom_call.1} parent=5 // pred_check
        _
      $region10: #{tpu_custom_call.1} parent=5 // pred_check_branch
        %132 = sbr.rel (%p129) target = $region12
      $region11: #{tpu_custom_call.1} parent=5 // pred_region
        %s133 = ssub.s32 %s20, 1
        // Predicated region
        $region13: #{tpu_custom_call.1} parent=11 // pred_check
          %p134 = pneg %p67
        $region14: #{tpu_custom_call.1} parent=11 // pred_check_branch
          %136 = sbr.rel (%p134) target = $region16
        $region15: #{tpu_custom_call.1} parent=11 // pred_region
          %s138 = ssub.s32 6144, 6144
          %139 = vsyncadd [#allocation6], %s138
          %s140 = sshll.u32 [#allocation5], 4
          %s141 = int_to_ptr.vmem [resolvable:$true] %s140
          %146 = dma.hbm_to_vmem [thread:$0]  %s1, 6144, %s141, [#allocation6], 128, 128, 8
        $region16: #{tpu_custom_call.1} parent=11 // pred_fallthru
          _
      $region12: #{tpu_custom_call.1} parent=5 // pred_fallthru
        _
      %p147 = scmp.lt.s32.totalorder %s20, 2
      // Predicated region
      $region17: #{tpu_custom_call.1} parent=5 // pred_check
        %p148 = pneg %p147
      $region18: #{tpu_custom_call.1} parent=5 // pred_check_branch
        %150 = sbr.rel (%p148) target = $region20
      $region19: #{tpu_custom_call.1} parent=5 // pred_region
        // Predicated region
        $region21: #{tpu_custom_call.1} parent=19 // pred_check
          %p151 = pneg %p40
        $region22: #{tpu_custom_call.1} parent=19 // pred_check_branch
          %153 = sbr.rel (%p151) target = $region24
        $region23: #{tpu_custom_call.1} parent=19 // pred_region
          %s154 = sand.u32 %s30, 1
          %s155 = scalar_lea.sflag [#allocation3], %s154
          %s156 = sand.u32 %s30, 1
          %s157 = smul.addr %s156, 16
          %s158 = scalar_lea.vmem [#allocation2], %s157
          %s160 = ssub.s32 256, 256
          %161 = vsyncadd %s155, %s160
          %s162 = smul.addr %s20, 2
          %s163 = smul.addr %s162, 128
          %s164 = scalar_lea.hbm %s0, %s163
          %s165 = sshll.u32 %s158, 4
          %s166 = int_to_ptr.vmem [resolvable:$true] %s165
          %171 = dma.hbm_to_vmem [thread:$0]  %s164, 256, %s166, %s155, 128, 128, 8
        $region24: #{tpu_custom_call.1} parent=19 // pred_fallthru
          _
      $region20: #{tpu_custom_call.1} parent=5 // pred_fallthru
        _
      %p172 = scmp.le.s32.totalorder 1, %s20
      %p173 = scmp.lt.s32.totalorder %s20, 3
      %p174 = pnand %p172, %p173
      %p175 = pneg %p174
      // Predicated region
      $region25: #{tpu_custom_call.1} parent=5 // pred_check
        _
      $region26: #{tpu_custom_call.1} parent=5 // pred_check_branch
        %177 = sbr.rel (%p174) target = $region28
      $region27: #{tpu_custom_call.1} parent=5 // pred_region
        %s178 = ssub.s32 %s20, 1
        %s179 = sand.u32 %s33, 1
        %s180 = scalar_lea.sflag [#allocation3], %s179
        %s181 = sand.u32 %s33, 1
        %s182 = smul.addr %s181, 16
        %s183 = scalar_lea.vmem [#allocation2], %s182
        // Predicated region
        $region29: #{tpu_custom_call.1} parent=27 // pred_check
          %p184 = pneg %p46
        $region30: #{tpu_custom_call.1} parent=27 // pred_check_branch
          %186 = sbr.rel (%p184) target = $region32
        $region31: #{tpu_custom_call.1} parent=27 // pred_region
          %187 = dma.done %s180, 256
        $region32: #{tpu_custom_call.1} parent=27 // pred_fallthru
          _
        // Predicated region
        $region33: #{tpu_custom_call.1} parent=27 // pred_check
          %p188 = pneg %p67
        $region34: #{tpu_custom_call.1} parent=27 // pred_check_branch
          %190 = sbr.rel (%p188) target = $region36
        $region35: #{tpu_custom_call.1} parent=27 // pred_region
          %191 = dma.done [#allocation6], 6144
        $region36: #{tpu_custom_call.1} parent=27 // pred_fallthru
          _
        %s192 = sand.u32 %s33, 1
        %s193 = scalar_lea.sflag [#allocation3], %s192
        %s194 = sand.u32 %s33, 1
        %s195 = smul.addr %s194, 16
        %s196 = scalar_lea.vmem [#allocation2], %s195
        %p197 = pneg %p46
        %p198 = pneg %p43
        %p199 = pneg %p67
        %p200 = pneg %p64
        %p201 = pneg %p93
        %p202 = pneg %p90
        %s203 = sand.u32 %s80, 1
        %s204 = scalar_lea.sflag [#allocation4], %s203
        %s205 = sand.u32 %s80, 1
        %s206 = smul.addr %s205, 16
        %s207 = scalar_lea.vmem [#allocation7], %s206
        %p208 = pneg %p119
        %p209 = pneg %p116
        %s210 = sand.u32 %s106, 1
        %s211 = scalar_lea.sflag [#allocation9], %s210
        %s212 = sand.u32 %s106, 1
        %s213 = smul.addr %s212, 2
        %s214 = scalar_lea.vmem [#allocation8], %s213
        %v215 = vld [vmem:[%s183] sm:$0xff]
        %v216 = vld [vmem:[%s183 + $0x8] sm:$0xff]
        %vm219 = vcmask 1040384
        %v220 = vrot.slane %v215, 7
        %v221 = vrot.slane %v216, 7
        %v222 = vsel %vm219, %v220, %v221
        %v225 = vsel %vm219, 0.0, %v220
        %vm226 = vcmask 1046528
        %v227 = vrot.slane %v215, 1
        %v228 = vrot.slane %v216, 1
        %v229 = vsel %vm226, %v227, %v228
        %v232 = vsel %vm226, %v228, 0.0
        %v233 = vld [vmem:[#allocation5] sm:$0xff]
        %v234 = vld [vmem:[#allocation5 + $0x8] sm:$0xff]
        %v235 = vld [vmem:[#allocation5 + $0x10] sm:$0xff]
        %v236 = vld [vmem:[#allocation5 + $0x18] sm:$0xff]
        %v237 = vld [vmem:[#allocation5 + $0x20] sm:$0xff]
        %v238 = vld [vmem:[#allocation5 + $0x28] sm:$0xff]
        %v239 = vld [vmem:[#allocation5 + $0x30] sm:$0xff]
        %v240 = vld [vmem:[#allocation5 + $0x38] sm:$0xff]
        %v241 = vld [vmem:[#allocation5 + $0x40] sm:$0xff]
        %v242 = vld [vmem:[#allocation5 + $0x48] sm:$0xff]
        %v243 = vld [vmem:[#allocation5 + $0x50] sm:$0xff]
        %v244 = vld [vmem:[#allocation5 + $0x58] sm:$0xff]
        %v245 = vld [vmem:[#allocation5 + $0x60] sm:$0xff]
        %v246 = vld [vmem:[#allocation5 + $0x68] sm:$0xff]
        %v247 = vld [vmem:[#allocation5 + $0x70] sm:$0xff]
        %v248 = vld [vmem:[#allocation5 + $0x78] sm:$0xff]
        %s249 = scalar_lea.vmem [#allocation5], 128
        %v250 = vld [vmem:[%s249] sm:$0xff]
        %v251 = vld [vmem:[%s249 + $0x8] sm:$0xff]
        %v252 = vld [vmem:[%s249 + $0x10] sm:$0xff]
        %v253 = vld [vmem:[%s249 + $0x18] sm:$0xff]
        %v254 = vld [vmem:[%s249 + $0x20] sm:$0xff]
        %v255 = vld [vmem:[%s249 + $0x28] sm:$0xff]
        %v256 = vld [vmem:[%s249 + $0x30] sm:$0xff]
        %v257 = vld [vmem:[%s249 + $0x38] sm:$0xff]
        %v258 = vld [vmem:[%s249 + $0x40] sm:$0xff]
        %v259 = vld [vmem:[%s249 + $0x48] sm:$0xff]
        %v260 = vld [vmem:[%s249 + $0x50] sm:$0xff]
        %v261 = vld [vmem:[%s249 + $0x58] sm:$0xff]
        %v262 = vld [vmem:[%s249 + $0x60] sm:$0xff]
        %v263 = vld [vmem:[%s249 + $0x68] sm:$0xff]
        %v264 = vld [vmem:[%s249 + $0x70] sm:$0xff]
        %v265 = vld [vmem:[%s249 + $0x78] sm:$0xff]
        %266 = vmatprep.subr.mxu0 0.0
        %267 = vmatpush1.msra.mxu0 %v250
        %268 = vmatprep.subr.mxu0 0.0
        %269 = vmatpush1.msra.mxu0 %v251
        %270 = vmatprep.subr.mxu0 0.0
        %271 = vmatpush1.msra.mxu0 %v252
        %272 = vmatprep.subr.mxu0 0.0
        %273 = vmatpush1.msra.mxu0 %v253
        %274 = vmatprep.subr.mxu0 0.0
        %275 = vmatpush1.msra.mxu0 %v254
        %276 = vmatprep.subr.mxu0 0.0
        %277 = vmatpush1.msra.mxu0 %v255
        %278 = vmatprep.subr.mxu0 0.0
        %279 = vmatpush1.msra.mxu0 %v256
        %280 = vmatprep.subr.mxu0 0.0
        %281 = vmatpush1.msra.mxu0 %v257
        %282 = vmatprep.subr.mxu0 0.0
        %283 = vmatpush1.msra.mxu0 %v258
        %284 = vmatprep.subr.mxu0 0.0
        %285 = vmatpush1.msra.mxu0 %v259
        %286 = vmatprep.subr.mxu0 0.0
        %287 = vmatpush1.msra.mxu0 %v260
        %288 = vmatprep.subr.mxu0 0.0
        %289 = vmatpush1.msra.mxu0 %v261
        %290 = vmatprep.subr.mxu0 0.0
        %291 = vmatpush1.msra.mxu0 %v262
        %292 = vmatprep.subr.mxu0 0.0
        %293 = vmatpush1.msra.mxu0 %v263
        %294 = vmatprep.subr.mxu0 0.0
        %295 = vmatpush1.msra.mxu0 %v264
        %296 = vmatprep.subr.mxu0 0.0
        %297 = vmatpush1.msra.mxu0 %v265
        %298 = vmatprep.subr.mxu0 0.0
        %299 = vmatpush1.msra.mxu0 0.0
        %300 = vmatprep.subr.mxu0 0.0
        %301 = vmatpush1.msra.mxu0 0.0
        %302 = vmatprep.subr.mxu0 0.0
        %303 = vmatpush1.msra.mxu0 0.0
        %304 = vmatprep.subr.mxu0 0.0
        %305 = vmatpush1.msra.mxu0 0.0
        %306 = vmatprep.subr.mxu0 0.0
        %307 = vmatpush1.msra.mxu0 0.0
        %308 = vmatprep.subr.mxu0 0.0
        %309 = vmatpush1.msra.mxu0 0.0
        %310 = vmatprep.subr.mxu0 0.0
        %311 = vmatpush1.msra.mxu0 0.0
        %312 = vmatprep.subr.mxu0 0.0
        %313 = vmatpush1.msra.mxu0 0.0
        %314 = vmatprep.subr.mxu0 0.0
        %315 = vmatpush1.msra.mxu0 0.0
        %316 = vmatprep.subr.mxu0 0.0
        %317 = vmatpush1.msra.mxu0 0.0
        %318 = vmatprep.subr.mxu0 0.0
        %319 = vmatpush1.msra.mxu0 0.0
        %320 = vmatprep.subr.mxu0 0.0
        %321 = vmatpush1.msra.mxu0 0.0
        %322 = vmatprep.subr.mxu0 0.0
        %323 = vmatpush1.msra.mxu0 0.0
        %324 = vmatprep.subr.mxu0 0.0
        %325 = vmatpush1.msra.mxu0 0.0
        %326 = vmatprep.subr.mxu0 0.0
        %327 = vmatpush1.msra.mxu0 0.0
        %328 = vmatprep.subr.mxu0 0.0
        %329 = vmatpush1.msra.mxu0 0.0
        %330 = vmatprep.mubr.f32.mxu0 0.0
        %331 = vmatmul.mubr.f32.gmra.mrb[0].mxu0 %v215
        %v332 = vpop.f32.mrb[0].mxu0
        %v333 = vadd.f32 0.0, %v332
        %v334 = vpop.f32.mrb[0].mxu0
        %335 = vmatprep.mubr.f32.mxu0 0.0
        %336 = vmatmul.mubr.f32.gmra.mrb[0].mxu0 %v216
        %v337 = vpop.f32.mrb[0].mxu0
        %v338 = vadd.f32 0.0, %v337
        %v339 = vpop.f32.mrb[0].mxu0
        %340 = vdwg.mxu0
        %341 = vmatprep.subr.mxu0 0.0
        %342 = vmatpush1.msra.mxu0 %v233
        %343 = vmatprep.subr.mxu0 0.0
        %344 = vmatpush1.msra.mxu0 %v234
        %345 = vmatprep.subr.mxu0 0.0
        %346 = vmatpush1.msra.mxu0 %v235
        %347 = vmatprep.subr.mxu0 0.0
        %348 = vmatpush1.msra.mxu0 %v236
        %349 = vmatprep.subr.mxu0 0.0
        %350 = vmatpush1.msra.mxu0 %v237
        %351 = vmatprep.subr.mxu0 0.0
        %352 = vmatpush1.msra.mxu0 %v238
        %353 = vmatprep.subr.mxu0 0.0
        %354 = vmatpush1.msra.mxu0 %v239
        %355 = vmatprep.subr.mxu0 0.0
        %356 = vmatpush1.msra.mxu0 %v240
        %357 = vmatprep.subr.mxu0 0.0
        %358 = vmatpush1.msra.mxu0 %v241
        %359 = vmatprep.subr.mxu0 0.0
        %360 = vmatpush1.msra.mxu0 %v242
        %361 = vmatprep.subr.mxu0 0.0
        %362 = vmatpush1.msra.mxu0 %v243
        %363 = vmatprep.subr.mxu0 0.0
        %364 = vmatpush1.msra.mxu0 %v244
        %365 = vmatprep.subr.mxu0 0.0
        %366 = vmatpush1.msra.mxu0 %v245
        %367 = vmatprep.subr.mxu0 0.0
        %368 = vmatpush1.msra.mxu0 %v246
        %369 = vmatprep.subr.mxu0 0.0
        %370 = vmatpush1.msra.mxu0 %v247
        %371 = vmatprep.subr.mxu0 0.0
        %372 = vmatpush1.msra.mxu0 %v248
        %373 = vmatprep.subr.mxu0 0.0
        %374 = vmatpush1.msra.mxu0 0.0
        %375 = vmatprep.subr.mxu0 0.0
        %376 = vmatpush1.msra.mxu0 0.0
        %377 = vmatprep.subr.mxu0 0.0
        %378 = vmatpush1.msra.mxu0 0.0
        %379 = vmatprep.subr.mxu0 0.0
        %380 = vmatpush1.msra.mxu0 0.0
        %381 = vmatprep.subr.mxu0 0.0
        %382 = vmatpush1.msra.mxu0 0.0
        %383 = vmatprep.subr.mxu0 0.0
        %384 = vmatpush1.msra.mxu0 0.0
        %385 = vmatprep.subr.mxu0 0.0
        %386 = vmatpush1.msra.mxu0 0.0
        %387 = vmatprep.subr.mxu0 0.0
        %388 = vmatpush1.msra.mxu0 0.0
        %389 = vmatprep.subr.mxu0 0.0
        %390 = vmatpush1.msra.mxu0 0.0
        %391 = vmatprep.subr.mxu0 0.0
        %392 = vmatpush1.msra.mxu0 0.0
        %393 = vmatprep.subr.mxu0 0.0
        %394 = vmatpush1.msra.mxu0 0.0
        %395 = vmatprep.subr.mxu0 0.0
        %396 = vmatpush1.msra.mxu0 0.0
        %397 = vmatprep.subr.mxu0 0.0
        %398 = vmatpush1.msra.mxu0 0.0
        %399 = vmatprep.subr.mxu0 0.0
        %400 = vmatpush1.msra.mxu0 0.0
        %401 = vmatprep.subr.mxu0 0.0
        %402 = vmatpush1.msra.mxu0 0.0
        %403 = vmatprep.subr.mxu0 0.0
        %404 = vmatpush1.msra.mxu0 0.0
        %405 = vmatprep.mubr.f32.mxu0 0.0
        %406 = vmatmul.mubr.f32.gmra.mrb[0].mxu0 %v225
        %v407 = vpop.f32.mrb[0].mxu0
        %v408 = vadd.f32 %v333, %v407
        %v409 = vpop.f32.mrb[0].mxu0
        %410 = vmatprep.mubr.f32.mxu0 0.0
        %411 = vmatmul.mubr.f32.gmra.mrb[0].mxu0 %v222
        %v412 = vpop.f32.mrb[0].mxu0
        %v413 = vadd.f32 %v338, %v412
        %v414 = vpop.f32.mrb[0].mxu0
        %415 = vdwg.mxu0
        %s416 = scalar_lea.vmem [#allocation5], 256
        %v417 = vld [vmem:[%s416] sm:$0xff]
        %v418 = vld [vmem:[%s416 + $0x8] sm:$0xff]
        %v419 = vld [vmem:[%s416 + $0x10] sm:$0xff]
        %v420 = vld [vmem:[%s416 + $0x18] sm:$0xff]
        %v421 = vld [vmem:[%s416 + $0x20] sm:$0xff]
        %v422 = vld [vmem:[%s416 + $0x28] sm:$0xff]
        %v423 = vld [vmem:[%s416 + $0x30] sm:$0xff]
        %v424 = vld [vmem:[%s416 + $0x38] sm:$0xff]
        %v425 = vld [vmem:[%s416 + $0x40] sm:$0xff]
        %v426 = vld [vmem:[%s416 + $0x48] sm:$0xff]
        %v427 = vld [vmem:[%s416 + $0x50] sm:$0xff]
        %v428 = vld [vmem:[%s416 + $0x58] sm:$0xff]
        %v429 = vld [vmem:[%s416 + $0x60] sm:$0xff]
        %v430 = vld [vmem:[%s416 + $0x68] sm:$0xff]
        %v431 = vld [vmem:[%s416 + $0x70] sm:$0xff]
        %v432 = vld [vmem:[%s416 + $0x78] sm:$0xff]
        %433 = vmatprep.subr.mxu0 0.0
        %434 = vmatpush1.msra.mxu0 %v417
        %435 = vmatprep.subr.mxu0 0.0
        %436 = vmatpush1.msra.mxu0 %v418
        %437 = vmatprep.subr.mxu0 0.0
        %438 = vmatpush1.msra.mxu0 %v419
        %439 = vmatprep.subr.mxu0 0.0
        %440 = vmatpush1.msra.mxu0 %v420
        %441 = vmatprep.subr.mxu0 0.0
        %442 = vmatpush1.msra.mxu0 %v421
        %443 = vmatprep.subr.mxu0 0.0
        %444 = vmatpush1.msra.mxu0 %v422
        %445 = vmatprep.subr.mxu0 0.0
        %446 = vmatpush1.msra.mxu0 %v423
        %447 = vmatprep.subr.mxu0 0.0
        %448 = vmatpush1.msra.mxu0 %v424
        %449 = vmatprep.subr.mxu0 0.0
        %450 = vmatpush1.msra.mxu0 %v425
        %451 = vmatprep.subr.mxu0 0.0
        %452 = vmatpush1.msra.mxu0 %v426
        %453 = vmatprep.subr.mxu0 0.0
        %454 = vmatpush1.msra.mxu0 %v427
        %455 = vmatprep.subr.mxu0 0.0
        %456 = vmatpush1.msra.mxu0 %v428
        %457 = vmatprep.subr.mxu0 0.0
        %458 = vmatpush1.msra.mxu0 %v429
        %459 = vmatprep.subr.mxu0 0.0
        %460 = vmatpush1.msra.mxu0 %v430
        %461 = vmatprep.subr.mxu0 0.0
        %462 = vmatpush1.msra.mxu0 %v431
        %463 = vmatprep.subr.mxu0 0.0
        %464 = vmatpush1.msra.mxu0 %v432
        %465 = vmatprep.subr.mxu0 0.0
        %466 = vmatpush1.msra.mxu0 0.0
        %467 = vmatprep.subr.mxu0 0.0
        %468 = vmatpush1.msra.mxu0 0.0
        %469 = vmatprep.subr.mxu0 0.0
        %470 = vmatpush1.msra.mxu0 0.0
        %471 = vmatprep.subr.mxu0 0.0
        %472 = vmatpush1.msra.mxu0 0.0
        %473 = vmatprep.subr.mxu0 0.0
        %474 = vmatpush1.msra.mxu0 0.0
        %475 = vmatprep.subr.mxu0 0.0
        %476 = vmatpush1.msra.mxu0 0.0
        %477 = vmatprep.subr.mxu0 0.0
        %478 = vmatpush1.msra.mxu0 0.0
        %479 = vmatprep.subr.mxu0 0.0
        %480 = vmatpush1.msra.mxu0 0.0
        %481 = vmatprep.subr.mxu0 0.0
        %482 = vmatpush1.msra.mxu0 0.0
        %483 = vmatprep.subr.mxu0 0.0
        %484 = vmatpush1.msra.mxu0 0.0
        %485 = vmatprep.subr.mxu0 0.0
        %486 = vmatpush1.msra.mxu0 0.0
        %487 = vmatprep.subr.mxu0 0.0
        %488 = vmatpush1.msra.mxu0 0.0
        %489 = vmatprep.subr.mxu0 0.0
        %490 = vmatpush1.msra.mxu0 0.0
        %491 = vmatprep.subr.mxu0 0.0
        %492 = vmatpush1.msra.mxu0 0.0
        %493 = vmatprep.subr.mxu0 0.0
        %494 = vmatpush1.msra.mxu0 0.0
        %495 = vmatprep.subr.mxu0 0.0
        %496 = vmatpush1.msra.mxu0 0.0
        %497 = vmatprep.mubr.f32.mxu0 0.0
        %498 = vmatmul.mubr.f32.gmra.mrb[0].mxu0 %v229
        %v499 = vpop.f32.mrb[0].mxu0
        %v500 = vadd.f32 0.0, %v499
        %v501 = vpop.f32.mrb[0].mxu0
        %502 = vmatprep.mubr.f32.mxu0 0.0
        %503 = vmatmul.mubr.f32.gmra.mrb[0].mxu0 %v232
        %v504 = vpop.f32.mrb[0].mxu0
        %v505 = vadd.f32 0.0, %v504
        %v506 = vpop.f32.mrb[0].mxu0
        %507 = vdwg.mxu0
        %v508 = vadd.f32 %v408, %v500
        %v509 = vadd.f32 %v413, %v505
        %510 = vst [vmem:[%s207] sm:$0xff] %v508
        %511 = vst [vmem:[%s207 + $0x8] sm:$0xff] %v509
        %v512 = vadd.f32 %v508, %v509
        %v513 = vrot.slane %v512, 4
        %v514 = vadd.f32 %v512, %v513
        %v515 = vrot.slane %v514, 2
        %v516 = vadd.f32 %v514, %v515
        %v517 = vrot.slane %v516, 1
        %v518 = vadd.f32 %v516, %v517
        %v519 = vmul.f32 %v508, %v508
        %v520 = vmul.f32 %v509, %v509
        %v521 = vadd.f32 %v519, %v520
        %v522 = vrot.slane %v521, 4
        %v523 = vadd.f32 %v521, %v522
        %v524 = vrot.slane %v523, 2
        %v525 = vadd.f32 %v523, %v524
        %v526 = vrot.slane %v525, 1
        %v527 = vadd.f32 %v525, %v526
        %v528 = vsel %vm219, %v518, %v527
        %529 = vst [vmem:[%s214] sm:$0x3] %v528
        %s530 = sand.u32 %s80, 1
        %s531 = scalar_lea.sflag [#allocation4], %s530
        %s532 = sand.u32 %s80, 1
        %s533 = smul.addr %s532, 16
        %s534 = scalar_lea.vmem [#allocation7], %s533
        %s535 = sand.u32 %s106, 1
        %s536 = scalar_lea.sflag [#allocation9], %s535
        %s537 = sand.u32 %s106, 1
        %s538 = smul.addr %s537, 2
        %s539 = scalar_lea.vmem [#allocation8], %s538
        // Predicated region
        $region37: #{tpu_custom_call.1} parent=27 // pred_check
          %p540 = pneg %p90
        $region38: #{tpu_custom_call.1} parent=27 // pred_check_branch
          %542 = sbr.rel (%p540) target = $region40
        $region39: #{tpu_custom_call.1} parent=27 // pred_region
          %s544 = ssub.s32 256, 256
          %545 = vsyncadd %s531, %s544
          %s546 = smul.addr %s25, 2
          %s547 = smul.addr %s546, 128
          %s548 = scalar_lea.hbm %s2, %s547
          %s549 = sshll.u32 %s534, 4
          %s550 = int_to_ptr.vmem [resolvable:$true] %s549
          %555 = dma.vmem_to_hbm [thread:$0]  %s550, 256, %s548, %s531, 128, 128, 8
        $region40: #{tpu_custom_call.1} parent=27 // pred_fallthru
          _
        // Predicated region
        $region41: #{tpu_custom_call.1} parent=27 // pred_check
          %p556 = pneg %p116
        $region42: #{tpu_custom_call.1} parent=27 // pred_check_branch
          %558 = sbr.rel (%p556) target = $region44
        $region43: #{tpu_custom_call.1} parent=27 // pred_region
          %s560 = ssub.s32 32, 32
          %561 = vsyncadd %s536, %s560
          %s562 = smul.addr %s25, 32
          %s563 = scalar_lea.hbm %s3, %s562
          %s565 = sshll.u32 %s539, 4
          %s566 = int_to_ptr.vmem [resolvable:$true] %s565
          %568 = dma.vmem_to_hbm [thread:$0]  %s566, 32, %s563, %s536
        $region44: #{tpu_custom_call.1} parent=27 // pred_fallthru
          _
      $region28: #{tpu_custom_call.1} parent=5 // pred_fallthru
        _
      %p569 = scmp.le.s32.totalorder 2, %s20
      // Predicated region
      $region45: #{tpu_custom_call.1} parent=5 // pred_check
        %p570 = pneg %p569
      $region46: #{tpu_custom_call.1} parent=5 // pred_check_branch
        %572 = sbr.rel (%p570) target = $region48
      $region47: #{tpu_custom_call.1} parent=5 // pred_region
        %s573 = ssub.s32 %s20, 2
        // Predicated region
        $region49: #{tpu_custom_call.1} parent=47 // pred_check
          %p574 = pneg %p96
        $region50: #{tpu_custom_call.1} parent=47 // pred_check_branch
          %576 = sbr.rel (%p574) target = $region52
        $region51: #{tpu_custom_call.1} parent=47 // pred_region
          %s577 = sand.u32 %s81, 1
          %s578 = scalar_lea.sflag [#allocation4], %s577
          %s579 = sand.u32 %s81, 1
          %s580 = smul.addr %s579, 16
          %s581 = scalar_lea.vmem [#allocation7], %s580
          %582 = dma.done %s578, 256
        $region52: #{tpu_custom_call.1} parent=47 // pred_fallthru
          _
        // Predicated region
        $region53: #{tpu_custom_call.1} parent=47 // pred_check
          %p583 = pneg %p122
        $region54: #{tpu_custom_call.1} parent=47 // pred_check_branch
          %585 = sbr.rel (%p583) target = $region56
        $region55: #{tpu_custom_call.1} parent=47 // pred_region
          %s586 = sand.u32 %s107, 1
          %s587 = scalar_lea.sflag [#allocation9], %s586
          %s588 = sand.u32 %s107, 1
          %s589 = smul.addr %s588, 2
          %s590 = scalar_lea.vmem [#allocation8], %s589
          %591 = dma.done %s587, 32
        $region56: #{tpu_custom_call.1} parent=47 // pred_fallthru
          _
      $region48: #{tpu_custom_call.1} parent=5 // pred_fallthru
        _
    $region6: #{tpu_custom_call.1} parent=1 // loop_footer
      %s24 = sadd.s32 1, %s20
    $region7: #{tpu_custom_call.1} parent=1 // loop_footer_branch
      %19 = sbr.rel target = $region3
    $region8: #{tpu_custom_call.1} parent=1 // loop_exit
      _
    %592 = vsyncpa [#allocation3], 1
    %s593 = scalar_lea.sflag [#allocation3], 1
    %594 = vsyncpa %s593, 1
    %595 = vsyncpa [#allocation6], 1
    %596 = vsyncpa [#allocation4], 1
    %s597 = scalar_lea.sflag [#allocation4], 1
    %598 = vsyncpa %s597, 1
    %599 = vsyncpa [#allocation9], 1
    %s600 = scalar_lea.sflag [#allocation9], 1
    %601 = vsyncpa %s600, 1

</llo_original>
